<compile_context>
chip_gen: v5e
topology: v5e:2x2
jax: 0.10.0
libtpu: 0.0.40
codegen_flags: <defaults>
</compile_context>

<pallas_src>
from functools import partial

import jax
import jax.numpy as jnp
from jax.experimental import pallas as pl
from jax.experimental.pallas import tpu as pltpu

IN_FEATURES = 5 * 41       # 205
HIDDEN = 256
OUT_FEATURES = 28 * 28     # 784


def _round_up(x, m):
    return (x + m - 1) // m * m


def _cdiv(a, b):
    return -(-a // b)


def _device_kind():
    try:
        return jax.devices()[0].device_kind.lower()
    except Exception:
        return ""


def recommended_compute_dtype():
    """bf16 matmul operands (with f32 accumulation) pay off most on v5e."""
    kind = _device_kind()
    if "v5e" in kind or "v5 lite" in kind or "v5lite" in kind:
        return jnp.bfloat16
    return jnp.float32


def _max_tile_and_vmem_limit(compute_itemsize, out_itemsize):
    """Per-generation batch-tile cap + scoped-VMEM limit override."""
    kind = _device_kind()
    if "v6" in kind:
        return 2048, 64 << 20                      # 128 MiB physical VMEM
    if "v7" in kind or "7x" in kind:
        if compute_itemsize <= 2 and out_itemsize <= 2:
            return 2048, 48 << 20                  # bf16 streams still < 64 MiB
        return 1024, None                          # f32: fits 32 MiB scoped default
    return 512, None                               # v5e / unknown: 16 MiB scoped


def _choose_tile(batch, max_tile, align):
    """Balanced, aligned batch tiles; >= 2 grid steps when there is enough work
    so the 'parallel' batch axis can feed both v7x TensorCores."""
    batch_a = _round_up(max(batch, 1), align)
    min_steps = 2 if batch_a > align else 1
    steps = max(min_steps, _cdiv(batch_a, max_tile))
    tile = _round_up(_cdiv(batch_a, steps), align)
    batch_pad = _round_up(batch_a, tile)
    return tile, batch_pad


def _mlp_kernel(x_ref, w1_ref, b1_ref, w2_ref, b2_ref, w3_ref, b3_ref, o_ref):
    # One batch tile per grid step; weights/biases are VMEM-resident and
    # single-buffered (constant block index + pl.Buffered(1)).
    x = x_ref[...].astype(w1_ref.dtype)                                  # (TB, 205)
    h = jnp.dot(x, w1_ref[...], preferred_element_type=jnp.float32)      # (TB, 256) f32 acc
    h = jnp.maximum(h + b1_ref[...], 0.0)                                # bias + ReLU in f32
    h = jnp.dot(h.astype(w2_ref.dtype), w2_ref[...],
                preferred_element_type=jnp.float32)                      # (TB, 256) f32 acc
    h = jnp.maximum(h + b2_ref[...], 0.0)
    h = jnp.dot(h.astype(w3_ref.dtype), w3_ref[...],
                preferred_element_type=jnp.float32)                      # (TB, 784) f32 acc
    o_ref[...] = (h + b3_ref[...]).astype(o_ref.dtype)


def init_params(key, dtype=jnp.float32):
    """nn.Linear-style U(-1/sqrt(fan_in), 1/sqrt(fan_in)) init.

    Weights are stored (in_features, out_features) so the kernel computes
    y = x @ W + b, matching PyTorch's y = x @ W_pt.T + b.
    """
    def linear(k, fan_in, fan_out):
        kw, kb = jax.random.split(k)
        bound = float(fan_in) ** -0.5
        w = jax.random.uniform(kw, (fan_in, fan_out), dtype, -bound, bound)
        b = jax.random.uniform(kb, (1, fan_out), dtype, -bound, bound)
        return w, b

    k1, k2, k3 = jax.random.split(key, 3)
    w1, b1 = linear(k1, IN_FEATURES, HIDDEN)
    w2, b2 = linear(k2, HIDDEN, HIDDEN)
    w3, b3 = linear(k3, HIDDEN, OUT_FEATURES)
    return (w1, b1, w2, b2, w3, b3)


def prepare_params(params, compute_dtype=jnp.float32):
    """Cast matmul operands ONCE (outside the kernel). No padding: every weight
    block is a full-array block.  Biases stay f32 (bias+ReLU run on f32 acc)."""
    w1, b1, w2, b2, w3, b3 = params
    return (w1.astype(compute_dtype), b1.astype(jnp.float32),
            w2.astype(compute_dtype), b2.astype(jnp.float32),
            w3.astype(compute_dtype), b3.astype(jnp.float32))


@partial(jax.jit, static_argnames=("out_dtype",))
def full_reco_net(x, prepared_params, out_dtype=None):
    w1, b1, w2, b2, w3, b3 = prepared_params
    out_dtype = jnp.dtype(x.dtype if out_dtype is None else out_dtype)

    # Glue: flatten exactly like x.view(-1, 5*41); x streams at its natural
    # 205-wide shape (the cast to the matmul dtype happens inside the kernel).
    xb = x.reshape(-1, IN_FEATURES)
    batch = xb.shape[0]

    x_item = jnp.dtype(xb.dtype).itemsize
    out_item = out_dtype.itemsize
    w_item = jnp.dtype(w1.dtype).itemsize
    # bf16 streams pack two rows per sublane -> round the batch tile to 16.
    row_align = 8 if min(x_item, out_item) >= 4 else 16

    max_tile, vmem_limit = _max_tile_and_vmem_limit(w_item, out_item)
    tile_b, batch_pad = _choose_tile(batch, max_tile, row_align)
    xb = jnp.pad(xb, ((0, batch_pad - batch), (0, 0)))   # no-op when already aligned

    grid = (batch_pad // tile_b,)

    def _resident(shape):
        # Constant block index -> no re-DMA across grid steps; Buffered(1) ->
        # single VMEM buffer for these never-changing operands.
        return pl.BlockSpec(shape, lambda i: (0, 0),
                            pipeline_mode=pl.Buffered(buffer_count=1))

    flops = 2 * batch_pad * (IN_FEATURES * HIDDEN + HIDDEN * HIDDEN + HIDDEN * OUT_FEATURES)
    bytes_accessed = (
        batch_pad * IN_FEATURES * x_item
        + batch_pad * OUT_FEATURES * out_item
        + sum(int(a.size) * a.dtype.itemsize for a in (w1, b1, w2, b2, w3, b3)))

    cp_kwargs = dict(dimension_semantics=("parallel",))   # megacore shard on v7x
    if vmem_limit is not None:
        cp_kwargs["vmem_limit_bytes"] = int(vmem_limit)

    out = pl.pallas_call(
        _mlp_kernel,
        out_shape=jax.ShapeDtypeStruct((batch_pad, OUT_FEATURES), out_dtype),
        grid=grid,
        in_specs=[
            pl.BlockSpec((tile_b, IN_FEATURES), lambda i: (i, 0)),  # x: streamed per tile
            _resident((IN_FEATURES, HIDDEN)),                       # w1 (205, 256)
            _resident((1, HIDDEN)),                                 # b1
            _resident((HIDDEN, HIDDEN)),                            # w2
            _resident((1, HIDDEN)),                                 # b2
            _resident((HIDDEN, OUT_FEATURES)),                      # w3 (256, 784)
            _resident((1, OUT_FEATURES)),                           # b3
        ],
        out_specs=pl.BlockSpec((tile_b, OUT_FEATURES), lambda i: (i, 0)),
        compiler_params=pltpu.CompilerParams(**cp_kwargs),
        cost_estimate=pl.CostEstimate(
            flops=int(flops), transcendentals=0, bytes_accessed=int(bytes_accessed)),
    )(xb, w1, b1, w2, b2, w3, b3)

    # Glue: drop batch padding only (no column slice any more), then reshape
    # exactly like x.view(-1, 1, 28, 28).
    return out[:batch].reshape(-1, 1, 28, 28)


def _reference(x, params):
    """Pure-JAX f32 reference for correctness checking."""
    w1, b1, w2, b2, w3, b3 = params
    xb = x.reshape(-1, IN_FEATURES).astype(jnp.float32)
    h = jnp.maximum(xb @ w1 + b1, 0.0)
    h = jnp.maximum(h @ w2 + b2, 0.0)
    h = h @ w3 + b3
    return h.reshape(-1, 1, 28, 28)


if __name__ == "__main__":
    key = jax.random.PRNGKey(0)
    kx, kp = jax.random.split(key)

    # Small batch; input shaped (B, 5, 41) -- forward flattens it to (B, 205).
    x = jax.random.normal(kx, (2, 5, 41), dtype=jnp.float32)
    params = init_params(kp)
    ref = _reference(x, params)

    # f32 path: numerically faithful to the PyTorch module.
    out_f32 = jax.block_until_ready(full_reco_net(x, prepare_params(params, jnp.float32)))
    assert out_f32.shape == (2, 1, 28, 28), out_f32.shape
    assert jnp.allclose(out_f32, ref, atol=1e-4, rtol=1e-4), "f32 mismatch vs reference"

    # bf16 operands + bf16 output (f32 accumulate inside): halves x/weight reads
    # and the dominant output write.  Recommended default on v5e
    # (prepare_params(params, recommended_compute_dtype())).
    out_bf16 = jax.block_until_ready(
        full_reco_net(x, prepare_params(params, jnp.bfloat16), out_dtype=jnp.bfloat16))
    assert out_bf16.shape == (2, 1, 28, 28), out_bf16.shape
    assert jnp.allclose(out_bf16.astype(jnp.float32), ref, atol=1.5e-1, rtol=5e-2), \
        "bf16 mismatch vs reference"

    print("KERNEL_OK")
</pallas_src>

<mosaic_0001>
module attributes {stable_mosaic.version = 11 : i64} {
  func.func @_mlp_kernel(%arg0: i32, %arg1: memref<8x205xf32, #tpu.memory_space<vmem>>, %arg2: memref<205x256xf32, #tpu.memory_space<vmem>>, %arg3: memref<1x256xf32, #tpu.memory_space<vmem>>, %arg4: memref<256x256xf32, #tpu.memory_space<vmem>>, %arg5: memref<1x256xf32, #tpu.memory_space<vmem>>, %arg6: memref<256x784xf32, #tpu.memory_space<vmem>>, %arg7: memref<1x784xf32, #tpu.memory_space<vmem>>, %arg8: memref<8x784xf32, #tpu.memory_space<vmem>>) attributes {dimension_semantics = [#tpu.dimension_semantics<parallel>], iteration_bounds = array<i64: 1>, scalar_prefetch = 0 : i64, scratch_operands = 0 : i64, tpu.core_type = #tpu.core_type<tc>, window_params = [{transform_indices = @transform_0, window_bounds = array<i64: 8, 205>}, {pipeline_mode = #tpu.pipeline_mode<synchronous>, transform_indices = @transform_1, window_bounds = array<i64: 205, 256>}, {pipeline_mode = #tpu.pipeline_mode<synchronous>, transform_indices = @transform_2, window_bounds = array<i64: 1, 256>}, {pipeline_mode = #tpu.pipeline_mode<synchronous>, transform_indices = @transform_3, window_bounds = array<i64: 256, 256>}, {pipeline_mode = #tpu.pipeline_mode<synchronous>, transform_indices = @transform_4, window_bounds = array<i64: 1, 256>}, {pipeline_mode = #tpu.pipeline_mode<synchronous>, transform_indices = @transform_5, window_bounds = array<i64: 256, 784>}, {pipeline_mode = #tpu.pipeline_mode<synchronous>, transform_indices = @transform_6, window_bounds = array<i64: 1, 784>}, {transform_indices = @transform_7, window_bounds = array<i64: 8, 784>}]} {
    %c0 = arith.constant 0 : index
    %c0_0 = arith.constant 0 : index
    %0 = vector.load %arg1[%c0, %c0_0] : memref<8x205xf32, #tpu.memory_space<vmem>>, vector<8x205xf32>
    %c0_1 = arith.constant 0 : index
    %c0_2 = arith.constant 0 : index
    %1 = vector.load %arg2[%c0_1, %c0_2] : memref<205x256xf32, #tpu.memory_space<vmem>>, vector<205x256xf32>
    %cst = arith.constant dense<0.000000e+00> : vector<8x256xf32>
    %2 = tpu.matmul %0, %1, %cst {dimension_numbers = #tpu.dot_dimension_numbers<[1], [0], [0], [1], [0, 0, 1, 1], [], []>} : vector<8x205xf32>, vector<205x256xf32>, vector<8x256xf32> -> vector<8x256xf32>
    %c0_3 = arith.constant 0 : index
    %c0_4 = arith.constant 0 : index
    %3 = vector.load %arg3[%c0_3, %c0_4] : memref<1x256xf32, #tpu.memory_space<vmem>>, vector<1x256xf32>
    %4 = vector.broadcast %3 : vector<1x256xf32> to vector<8x256xf32>
    %5 = arith.addf %2, %4 : vector<8x256xf32>
    %cst_5 = arith.constant 0.000000e+00 : f32
    %6 = vector.broadcast %cst_5 : f32 to vector<8x256xf32>
    %7 = arith.maximumf %5, %6 : vector<8x256xf32>
    %c0_6 = arith.constant 0 : index
    %c0_7 = arith.constant 0 : index
    %8 = vector.load %arg4[%c0_6, %c0_7] : memref<256x256xf32, #tpu.memory_space<vmem>>, vector<256x256xf32>
    %cst_8 = arith.constant dense<0.000000e+00> : vector<8x256xf32>
    %9 = tpu.matmul %7, %8, %cst_8 {dimension_numbers = #tpu.dot_dimension_numbers<[1], [0], [0], [1], [0, 0, 1, 1], [], []>} : vector<8x256xf32>, vector<256x256xf32>, vector<8x256xf32> -> vector<8x256xf32>
    %c0_9 = arith.constant 0 : index
    %c0_10 = arith.constant 0 : index
    %10 = vector.load %arg5[%c0_9, %c0_10] : memref<1x256xf32, #tpu.memory_space<vmem>>, vector<1x256xf32>
    %11 = vector.broadcast %10 : vector<1x256xf32> to vector<8x256xf32>
    %12 = arith.addf %9, %11 : vector<8x256xf32>
    %cst_11 = arith.constant 0.000000e+00 : f32
    %13 = vector.broadcast %cst_11 : f32 to vector<8x256xf32>
    %14 = arith.maximumf %12, %13 : vector<8x256xf32>
    %c0_12 = arith.constant 0 : index
    %c0_13 = arith.constant 0 : index
    %15 = vector.load %arg6[%c0_12, %c0_13] : memref<256x784xf32, #tpu.memory_space<vmem>>, vector<256x784xf32>
    %cst_14 = arith.constant dense<0.000000e+00> : vector<8x784xf32>
    %16 = tpu.matmul %14, %15, %cst_14 {dimension_numbers = #tpu.dot_dimension_numbers<[1], [0], [0], [1], [0, 0, 1, 1], [], []>} : vector<8x256xf32>, vector<256x784xf32>, vector<8x784xf32> -> vector<8x784xf32>
    %c0_15 = arith.constant 0 : index
    %c0_16 = arith.constant 0 : index
    %17 = vector.load %arg7[%c0_15, %c0_16] : memref<1x784xf32, #tpu.memory_space<vmem>>, vector<1x784xf32>
    %18 = vector.broadcast %17 : vector<1x784xf32> to vector<8x784xf32>
    %19 = arith.addf %16, %18 : vector<8x784xf32>
    %c0_17 = arith.constant 0 : index
    %c0_18 = arith.constant 0 : index
    %20 = vector.load %arg8[%c0_17, %c0_18] : memref<8x784xf32, #tpu.memory_space<vmem>>, vector<8x784xf32>
    tpu.vector_store %arg8[%c0_17, %c0_18], %19 {strides = array<i32>} : memref<8x784xf32, #tpu.memory_space<vmem>>, vector<8x784xf32>,
    return
  }
  func.func @transform_0(%arg0: i32) -> (i32, i32) {
    %c0_i32 = arith.constant 0 : i32
    %c0_i32_0 = arith.constant 0 : i32
    return %arg0, %c0_i32 : i32, i32
  }
  func.func @transform_1(%arg0: i32) -> (i32, i32) {
    %c0_i32 = arith.constant 0 : i32
    %c0_i32_0 = arith.constant 0 : i32
    %c0_i32_1 = arith.constant 0 : i32
    return %c0_i32, %c0_i32_0 : i32, i32
  }
  func.func @transform_2(%arg0: i32) -> (i32, i32) {
    %c0_i32 = arith.constant 0 : i32
    %c0_i32_0 = arith.constant 0 : i32
    %c0_i32_1 = arith.constant 0 : i32
    return %c0_i32, %c0_i32_0 : i32, i32
  }
  func.func @transform_3(%arg0: i32) -> (i32, i32) {
    %c0_i32 = arith.constant 0 : i32
    %c0_i32_0 = arith.constant 0 : i32
    %c0_i32_1 = arith.constant 0 : i32
    return %c0_i32, %c0_i32_0 : i32, i32
  }
  func.func @transform_4(%arg0: i32) -> (i32, i32) {
    %c0_i32 = arith.constant 0 : i32
    %c0_i32_0 = arith.constant 0 : i32
    %c0_i32_1 = arith.constant 0 : i32
    return %c0_i32, %c0_i32_0 : i32, i32
  }
  func.func @transform_5(%arg0: i32) -> (i32, i32) {
    %c0_i32 = arith.constant 0 : i32
    %c0_i32_0 = arith.constant 0 : i32
    %c0_i32_1 = arith.constant 0 : i32
    return %c0_i32, %c0_i32_0 : i32, i32
  }
  func.func @transform_6(%arg0: i32) -> (i32, i32) {
    %c0_i32 = arith.constant 0 : i32
    %c0_i32_0 = arith.constant 0 : i32
    %c0_i32_1 = arith.constant 0 : i32
    return %c0_i32, %c0_i32_0 : i32, i32
  }
  func.func @transform_7(%arg0: i32) -> (i32, i32) {
    %c0_i32 = arith.constant 0 : i32
    %c0_i32_0 = arith.constant 0 : i32
    return %arg0, %c0_i32 : i32, i32
  }
}

</mosaic_0001>

<llo_original>
// kernel: full_reco_net.1
$region0: #{full_reco_net.1}
  #allocation0 [shape = 'u32[]', space=smem, size = 0x4, offset = 0x4, fixed_abs, tag = 'smem constant byte address 0x4 - core index']
  #allocation1 [shape = 'u32[72,128]{1,0:T(1,128)}', space=vmem, size = 0x9000, scoped, tag = 'internal scratch']
  %s0 = inlined_call_operand.vmem [shape: f32[8,205], index: 0, kind: input, shape index: {}]
  %s1 = inlined_call_operand.vmem [shape: f32[205,256], index: 1, kind: input, shape index: {}]
  %s2 = inlined_call_operand.vmem [shape: f32[1,256], index: 2, kind: input, shape index: {}]
  %s3 = inlined_call_operand.vmem [shape: f32[256,256], index: 3, kind: input, shape index: {}]
  %s4 = inlined_call_operand.vmem [shape: f32[1,256], index: 4, kind: input, shape index: {}]
  %s5 = inlined_call_operand.vmem [shape: f32[256,784], index: 5, kind: input, shape index: {}]
  %s6 = inlined_call_operand.vmem [shape: f32[1,784], index: 6, kind: input, shape index: {}]
  %s7 = inlined_call_operand.vmem [shape: f32[8,784], index: 7, kind: output, shape index: {}]
  %s8 = sld [smem:[#allocation0]]
  $region38: #{full_reco_net.1} parent=0
    _
  %s10 = ssub.s32 1, %s8
  %s11 = scalar_select 0, %s10, %s8
  // Predicated region
  $region2: #{full_reco_net.1} parent=0 // pred_check
    _
  $region3: #{full_reco_net.1} parent=0 // pred_check_branch
    %13 = sbr.rel (0) target = $region5
  $region4: #{full_reco_net.1} parent=0 // pred_region
    _
  $region5: #{full_reco_net.1} parent=0 // pred_fallthru
    _
  // Predicated region
  $region6: #{full_reco_net.1} parent=0 // pred_check
    _
  $region7: #{full_reco_net.1} parent=0 // pred_check_branch
    %15 = sbr.rel (0) target = $region9
  $region8: #{full_reco_net.1} parent=0 // pred_region
    _
  $region9: #{full_reco_net.1} parent=0 // pred_fallthru
    _
  // Predicated region
  $region10: #{full_reco_net.1} parent=0 // pred_check
    _
  $region11: #{full_reco_net.1} parent=0 // pred_check_branch
    %17 = sbr.rel (0) target = $region13
  $region12: #{full_reco_net.1} parent=0 // pred_region
    _
  $region13: #{full_reco_net.1} parent=0 // pred_fallthru
    _
  // Predicated region
  $region14: #{full_reco_net.1} parent=0 // pred_check
    _
  $region15: #{full_reco_net.1} parent=0 // pred_check_branch
    %19 = sbr.rel (0) target = $region17
  $region16: #{full_reco_net.1} parent=0 // pred_region
    _
  $region17: #{full_reco_net.1} parent=0 // pred_fallthru
    _
  // Predicated region
  $region18: #{full_reco_net.1} parent=0 // pred_check
    _
  $region19: #{full_reco_net.1} parent=0 // pred_check_branch
    %21 = sbr.rel (0) target = $region21
  $region20: #{full_reco_net.1} parent=0 // pred_region
    _
  $region21: #{full_reco_net.1} parent=0 // pred_fallthru
    _
  // Predicated region
  $region22: #{full_reco_net.1} parent=0 // pred_check
    _
  $region23: #{full_reco_net.1} parent=0 // pred_check_branch
    %23 = sbr.rel (0) target = $region25
  $region24: #{full_reco_net.1} parent=0 // pred_region
    _
  $region25: #{full_reco_net.1} parent=0 // pred_fallthru
    _
  // Predicated region
  $region26: #{full_reco_net.1} parent=0 // pred_check
    _
  $region27: #{full_reco_net.1} parent=0 // pred_check_branch
    %25 = sbr.rel (0) target = $region29
  $region28: #{full_reco_net.1} parent=0 // pred_region
    _
  $region29: #{full_reco_net.1} parent=0 // pred_fallthru
    _
  %v26 = vld [vmem:[%s0] sm:$0xff]
  %v27 = vld [vmem:[%s0 + $0x8] sm:$0xff]
  %v28 = vld [vmem:[%s1] sm:$0xff]
  %v29 = vld [vmem:[%s1 + $0x8] sm:$0xff]
  %v30 = vld [vmem:[%s1 + $0x10] sm:$0xff]
  %v31 = vld [vmem:[%s1 + $0x18] sm:$0xff]
  %v32 = vld [vmem:[%s1 + $0x20] sm:$0xff]
  %v33 = vld [vmem:[%s1 + $0x28] sm:$0xff]
  %v34 = vld [vmem:[%s1 + $0x30] sm:$0xff]
  %v35 = vld [vmem:[%s1 + $0x38] sm:$0xff]
  %v36 = vld [vmem:[%s1 + $0x40] sm:$0xff]
  %v37 = vld [vmem:[%s1 + $0x48] sm:$0xff]
  %v38 = vld [vmem:[%s1 + $0x50] sm:$0xff]
  %v39 = vld [vmem:[%s1 + $0x58] sm:$0xff]
  %v40 = vld [vmem:[%s1 + $0x60] sm:$0xff]
  %v41 = vld [vmem:[%s1 + $0x68] sm:$0xff]
  %v42 = vld [vmem:[%s1 + $0x70] sm:$0xff]
  %v43 = vld [vmem:[%s1 + $0x78] sm:$0xff]
  %v44 = vld [vmem:[%s1 + $0x80] sm:$0xff]
  %v45 = vld [vmem:[%s1 + $0x88] sm:$0xff]
  %v46 = vld [vmem:[%s1 + $0x90] sm:$0xff]
  %v47 = vld [vmem:[%s1 + $0x98] sm:$0xff]
  %v48 = vld [vmem:[%s1 + $0xa0] sm:$0xff]
  %v49 = vld [vmem:[%s1 + $0xa8] sm:$0xff]
  %v50 = vld [vmem:[%s1 + $0xb0] sm:$0xff]
  %v51 = vld [vmem:[%s1 + $0xb8] sm:$0xff]
  %v52 = vld [vmem:[%s1 + $0xc0] sm:$0xff]
  %v53 = vld [vmem:[%s1 + $0xc8] sm:$0xff]
  %v54 = vld [vmem:[%s1 + $0xd0] sm:$0xff]
  %v55 = vld [vmem:[%s1 + $0xd8] sm:$0xff]
  %v56 = vld [vmem:[%s1 + $0xe0] sm:$0xff]
  %v57 = vld [vmem:[%s1 + $0xe8] sm:$0xff]
  %v58 = vld [vmem:[%s1 + $0xf0] sm:$0xff]
  %v59 = vld [vmem:[%s1 + $0xf8] sm:$0xff]
  %v60 = vld [vmem:[%s1 + $0x100] sm:$0xff]
  %v61 = vld [vmem:[%s1 + $0x108] sm:$0xff]
  %v62 = vld [vmem:[%s1 + $0x110] sm:$0xff]
  %v63 = vld [vmem:[%s1 + $0x118] sm:$0xff]
  %v64 = vld [vmem:[%s1 + $0x120] sm:$0xff]
  %v65 = vld [vmem:[%s1 + $0x128] sm:$0xff]
  %v66 = vld [vmem:[%s1 + $0x130] sm:$0xff]
  %v67 = vld [vmem:[%s1 + $0x138] sm:$0xff]
  %v68 = vld [vmem:[%s1 + $0x140] sm:$0xff]
  %v69 = vld [vmem:[%s1 + $0x148] sm:$0xff]
  %v70 = vld [vmem:[%s1 + $0x150] sm:$0xff]
  %v71 = vld [vmem:[%s1 + $0x158] sm:$0xff]
  %v72 = vld [vmem:[%s1 + $0x160] sm:$0xff]
  %v73 = vld [vmem:[%s1 + $0x168] sm:$0xff]
  %v74 = vld [vmem:[%s1 + $0x170] sm:$0xff]
  %v75 = vld [vmem:[%s1 + $0x178] sm:$0xff]
  %v76 = vld [vmem:[%s1 + $0x180] sm:$0xff]
  %v77 = vld [vmem:[%s1 + $0x188] sm:$0xff]
  %v78 = vld [vmem:[%s1 + $0x190] sm:$0x1f]
  %v79 = vld [vmem:[%s1 + $0x198] sm:$0x1f]
  %v80 = vld [vmem:[%s2] sm:$0x3]
  %v82 = vperm.slane %v80, 0
  %v83 = vperm.slane %v80, 1
  %vm86 = vcmask 629760
  %v88 = vsel %vm86, %v27, 0
  %vm90 = vcmask 1044480
  %v92 = vsel %vm90, %v78, 0
  %v95 = vsel %vm90, %v79, 0
  %97 = vmatpush.msra.mxu0 %v58
  %98 = vmatpush.msra.mxu0 %v56
  %99 = vmatpush.msra.mxu0 %v54
  %100 = vmatpush.msra.mxu0 %v52
  %101 = vmatpush.msra.mxu0 %v50
  %102 = vmatpush.msra.mxu0 %v48
  %103 = vmatpush.msra.mxu0 %v46
  %104 = vmatpush.msra.mxu0 %v44
  %105 = vmatpush.msra.mxu0 %v42
  %106 = vmatpush.msra.mxu0 %v40
  %107 = vmatpush.msra.mxu0 %v38
  %108 = vmatpush.msra.mxu0 %v36
  %109 = vmatpush.msra.mxu0 %v34
  %110 = vmatpush.msra.mxu0 %v32
  %111 = vmatpush.msra.mxu0 %v30
  %112 = vmatpush.msra.mxu0 %v28
  %113 = vmatmul.f32.gmra.mxu0 %v26
  %v114 = vpop.f32.mrf.mxu0
  %v115 = vadd.f32 %v82, %v114
  %116 = vdwg.mxu0
  %117 = vmatpush.msra.mxu0 0.0
  %118 = vmatpush.msra.mxu0 0.0
  %119 = vmatpush.msra.mxu0 0.0
  %120 = vmatpush.msra.mxu0 0.0
  %121 = vmatpush.msra.mxu0 0.0
  %122 = vmatpush.msra.mxu0 0.0
  %123 = vmatpush.msra.mxu0 %v92
  %124 = vmatpush.msra.mxu0 %v76
  %125 = vmatpush.msra.mxu0 %v74
  %126 = vmatpush.msra.mxu0 %v72
  %127 = vmatpush.msra.mxu0 %v70
  %128 = vmatpush.msra.mxu0 %v68
  %129 = vmatpush.msra.mxu0 %v66
  %130 = vmatpush.msra.mxu0 %v64
  %131 = vmatpush.msra.mxu0 %v62
  %132 = vmatpush.msra.mxu0 %v60
  %133 = vmatmul.f32.gmra.mxu0 %v88
  %v134 = vpop.f32.mrf.mxu0
  %v135 = vadd.f32 %v115, %v134
  %136 = vdwg.mxu0
  %137 = vmatpush.msra.mxu0 %v59
  %138 = vmatpush.msra.mxu0 %v57
  %139 = vmatpush.msra.mxu0 %v55
  %140 = vmatpush.msra.mxu0 %v53
  %141 = vmatpush.msra.mxu0 %v51
  %142 = vmatpush.msra.mxu0 %v49
  %143 = vmatpush.msra.mxu0 %v47
  %144 = vmatpush.msra.mxu0 %v45
  %145 = vmatpush.msra.mxu0 %v43
  %146 = vmatpush.msra.mxu0 %v41
  %147 = vmatpush.msra.mxu0 %v39
  %148 = vmatpush.msra.mxu0 %v37
  %149 = vmatpush.msra.mxu0 %v35
  %150 = vmatpush.msra.mxu0 %v33
  %151 = vmatpush.msra.mxu0 %v31
  %152 = vmatpush.msra.mxu0 %v29
  %153 = vmatmul.f32.gmra.mxu0 %v26
  %v154 = vpop.f32.mrf.mxu0
  %v155 = vadd.f32 %v83, %v154
  %156 = vdwg.mxu0
  %157 = vmatpush.msra.mxu0 0.0
  %158 = vmatpush.msra.mxu0 0.0
  %159 = vmatpush.msra.mxu0 0.0
  %160 = vmatpush.msra.mxu0 0.0
  %161 = vmatpush.msra.mxu0 0.0
  %162 = vmatpush.msra.mxu0 0.0
  %163 = vmatpush.msra.mxu0 %v95
  %164 = vmatpush.msra.mxu0 %v77
  %165 = vmatpush.msra.mxu0 %v75
  %166 = vmatpush.msra.mxu0 %v73
  %167 = vmatpush.msra.mxu0 %v71
  %168 = vmatpush.msra.mxu0 %v69
  %169 = vmatpush.msra.mxu0 %v67
  %170 = vmatpush.msra.mxu0 %v65
  %171 = vmatpush.msra.mxu0 %v63
  %172 = vmatpush.msra.mxu0 %v61
  %173 = vmatmul.f32.gmra.mxu0 %v88
  %v174 = vpop.f32.mrf.mxu0
  %v175 = vadd.f32 %v155, %v174
  %176 = vdwg.mxu0
  %v177 = vmax.f32 %v135, 0.0
  %v178 = vmax.f32 %v175, 0.0
  %v179 = vld [vmem:[%s3] sm:$0xff]
  %v180 = vld [vmem:[%s3 + $0x8] sm:$0xff]
  %v181 = vld [vmem:[%s3 + $0x10] sm:$0xff]
  %v182 = vld [vmem:[%s3 + $0x18] sm:$0xff]
  %v183 = vld [vmem:[%s3 + $0x20] sm:$0xff]
  %v184 = vld [vmem:[%s3 + $0x28] sm:$0xff]
  %v185 = vld [vmem:[%s3 + $0x30] sm:$0xff]
  %v186 = vld [vmem:[%s3 + $0x38] sm:$0xff]
  %v187 = vld [vmem:[%s3 + $0x40] sm:$0xff]
  %v188 = vld [vmem:[%s3 + $0x48] sm:$0xff]
  %v189 = vld [vmem:[%s3 + $0x50] sm:$0xff]
  %v190 = vld [vmem:[%s3 + $0x58] sm:$0xff]
  %v191 = vld [vmem:[%s3 + $0x60] sm:$0xff]
  %v192 = vld [vmem:[%s3 + $0x68] sm:$0xff]
  %v193 = vld [vmem:[%s3 + $0x70] sm:$0xff]
  %v194 = vld [vmem:[%s3 + $0x78] sm:$0xff]
  %v195 = vld [vmem:[%s3 + $0x80] sm:$0xff]
  %v196 = vld [vmem:[%s3 + $0x88] sm:$0xff]
  %v197 = vld [vmem:[%s3 + $0x90] sm:$0xff]
  %v198 = vld [vmem:[%s3 + $0x98] sm:$0xff]
  %v199 = vld [vmem:[%s3 + $0xa0] sm:$0xff]
  %v200 = vld [vmem:[%s3 + $0xa8] sm:$0xff]
  %v201 = vld [vmem:[%s3 + $0xb0] sm:$0xff]
  %v202 = vld [vmem:[%s3 + $0xb8] sm:$0xff]
  %v203 = vld [vmem:[%s3 + $0xc0] sm:$0xff]
  %v204 = vld [vmem:[%s3 + $0xc8] sm:$0xff]
  %v205 = vld [vmem:[%s3 + $0xd0] sm:$0xff]
  %v206 = vld [vmem:[%s3 + $0xd8] sm:$0xff]
  %v207 = vld [vmem:[%s3 + $0xe0] sm:$0xff]
  %v208 = vld [vmem:[%s3 + $0xe8] sm:$0xff]
  %v209 = vld [vmem:[%s3 + $0xf0] sm:$0xff]
  %v210 = vld [vmem:[%s3 + $0xf8] sm:$0xff]
  %v211 = vld [vmem:[%s3 + $0x100] sm:$0xff]
  %v212 = vld [vmem:[%s3 + $0x108] sm:$0xff]
  %v213 = vld [vmem:[%s3 + $0x110] sm:$0xff]
  %v214 = vld [vmem:[%s3 + $0x118] sm:$0xff]
  %v215 = vld [vmem:[%s3 + $0x120] sm:$0xff]
  %v216 = vld [vmem:[%s3 + $0x128] sm:$0xff]
  %v217 = vld [vmem:[%s3 + $0x130] sm:$0xff]
  %v218 = vld [vmem:[%s3 + $0x138] sm:$0xff]
  %v219 = vld [vmem:[%s3 + $0x140] sm:$0xff]
  %v220 = vld [vmem:[%s3 + $0x148] sm:$0xff]
  %v221 = vld [vmem:[%s3 + $0x150] sm:$0xff]
  %v222 = vld [vmem:[%s3 + $0x158] sm:$0xff]
  %v223 = vld [vmem:[%s3 + $0x160] sm:$0xff]
  %v224 = vld [vmem:[%s3 + $0x168] sm:$0xff]
  %v225 = vld [vmem:[%s3 + $0x170] sm:$0xff]
  %v226 = vld [vmem:[%s3 + $0x178] sm:$0xff]
  %v227 = vld [vmem:[%s3 + $0x180] sm:$0xff]
  %v228 = vld [vmem:[%s3 + $0x188] sm:$0xff]
  %v229 = vld [vmem:[%s3 + $0x190] sm:$0xff]
  %v230 = vld [vmem:[%s3 + $0x198] sm:$0xff]
  %v231 = vld [vmem:[%s3 + $0x1a0] sm:$0xff]
  %v232 = vld [vmem:[%s3 + $0x1a8] sm:$0xff]
  %v233 = vld [vmem:[%s3 + $0x1b0] sm:$0xff]
  %v234 = vld [vmem:[%s3 + $0x1b8] sm:$0xff]
  %v235 = vld [vmem:[%s3 + $0x1c0] sm:$0xff]
  %v236 = vld [vmem:[%s3 + $0x1c8] sm:$0xff]
  %v237 = vld [vmem:[%s3 + $0x1d0] sm:$0xff]
  %v238 = vld [vmem:[%s3 + $0x1d8] sm:$0xff]
  %v239 = vld [vmem:[%s3 + $0x1e0] sm:$0xff]
  %v240 = vld [vmem:[%s3 + $0x1e8] sm:$0xff]
  %v241 = vld [vmem:[%s3 + $0x1f0] sm:$0xff]
  %v242 = vld [vmem:[%s3 + $0x1f8] sm:$0xff]
  %v243 = vld [vmem:[%s4] sm:$0x3]
  %v245 = vperm.slane %v243, 0
  %v246 = vperm.slane %v243, 1
  %249 = vmatpush.msra.mxu0 %v209
  %250 = vmatpush.msra.mxu0 %v207
  %251 = vmatpush.msra.mxu0 %v205
  %252 = vmatpush.msra.mxu0 %v203
  %253 = vmatpush.msra.mxu0 %v201
  %254 = vmatpush.msra.mxu0 %v199
  %255 = vmatpush.msra.mxu0 %v197
  %256 = vmatpush.msra.mxu0 %v195
  %257 = vmatpush.msra.mxu0 %v193
  %258 = vmatpush.msra.mxu0 %v191
  %259 = vmatpush.msra.mxu0 %v189
  %260 = vmatpush.msra.mxu0 %v187
  %261 = vmatpush.msra.mxu0 %v185
  %262 = vmatpush.msra.mxu0 %v183
  %263 = vmatpush.msra.mxu0 %v181
  %264 = vmatpush.msra.mxu0 %v179
  %265 = vmatmul.f32.gmra.mxu0 %v177
  %v266 = vpop.f32.mrf.mxu0
  %v267 = vadd.f32 %v245, %v266
  %268 = vdwg.mxu0
  %269 = vmatpush.msra.mxu0 %v241
  %270 = vmatpush.msra.mxu0 %v239
  %271 = vmatpush.msra.mxu0 %v237
  %272 = vmatpush.msra.mxu0 %v235
  %273 = vmatpush.msra.mxu0 %v233
  %274 = vmatpush.msra.mxu0 %v231
  %275 = vmatpush.msra.mxu0 %v229
  %276 = vmatpush.msra.mxu0 %v227
  %277 = vmatpush.msra.mxu0 %v225
  %278 = vmatpush.msra.mxu0 %v223
  %279 = vmatpush.msra.mxu0 %v221
  %280 = vmatpush.msra.mxu0 %v219
  %281 = vmatpush.msra.mxu0 %v217
  %282 = vmatpush.msra.mxu0 %v215
  %283 = vmatpush.msra.mxu0 %v213
  %284 = vmatpush.msra.mxu0 %v211
  %285 = vmatmul.f32.gmra.mxu0 %v178
  %v286 = vpop.f32.mrf.mxu0
  %v287 = vadd.f32 %v267, %v286
  %288 = vdwg.mxu0
  %289 = vmatpush.msra.mxu0 %v210
  %290 = vmatpush.msra.mxu0 %v208
  %291 = vmatpush.msra.mxu0 %v206
  %292 = vmatpush.msra.mxu0 %v204
  %293 = vmatpush.msra.mxu0 %v202
  %294 = vmatpush.msra.mxu0 %v200
  %295 = vmatpush.msra.mxu0 %v198
  %296 = vmatpush.msra.mxu0 %v196
  %297 = vmatpush.msra.mxu0 %v194
  %298 = vmatpush.msra.mxu0 %v192
  %299 = vmatpush.msra.mxu0 %v190
  %300 = vmatpush.msra.mxu0 %v188
  %301 = vmatpush.msra.mxu0 %v186
  %302 = vmatpush.msra.mxu0 %v184
  %303 = vmatpush.msra.mxu0 %v182
  %304 = vmatpush.msra.mxu0 %v180
  %305 = vmatmul.f32.gmra.mxu0 %v177
  %v306 = vpop.f32.mrf.mxu0
  %v307 = vadd.f32 %v246, %v306
  %308 = vdwg.mxu0
  %309 = vmatpush.msra.mxu0 %v242
  %310 = vmatpush.msra.mxu0 %v240
  %311 = vmatpush.msra.mxu0 %v238
  %312 = vmatpush.msra.mxu0 %v236
  %313 = vmatpush.msra.mxu0 %v234
  %314 = vmatpush.msra.mxu0 %v232
  %315 = vmatpush.msra.mxu0 %v230
  %316 = vmatpush.msra.mxu0 %v228
  %317 = vmatpush.msra.mxu0 %v226
  %318 = vmatpush.msra.mxu0 %v224
  %319 = vmatpush.msra.mxu0 %v222
  %320 = vmatpush.msra.mxu0 %v220
  %321 = vmatpush.msra.mxu0 %v218
  %322 = vmatpush.msra.mxu0 %v216
  %323 = vmatpush.msra.mxu0 %v214
  %324 = vmatpush.msra.mxu0 %v212
  %325 = vmatmul.f32.gmra.mxu0 %v178
  %v326 = vpop.f32.mrf.mxu0
  %v327 = vadd.f32 %v307, %v326
  %328 = vdwg.mxu0
  %v329 = vmax.f32 %v287, 0.0
  %v330 = vmax.f32 %v327, 0.0
  %v331 = vld [vmem:[%s5] sm:$0xff]
  %v332 = vld [vmem:[%s5 + $0x8] sm:$0xff]
  %v333 = vld [vmem:[%s5 + $0x10] sm:$0xff]
  %v334 = vld [vmem:[%s5 + $0x18] sm:$0xff]
  %v335 = vld [vmem:[%s5 + $0x20] sm:$0xff]
  %v336 = vld [vmem:[%s5 + $0x28] sm:$0xff]
  %v337 = vld [vmem:[%s5 + $0x30] sm:$0xff]
  %v338 = vld [vmem:[%s5 + $0x38] sm:$0xff]
  %v339 = vld [vmem:[%s5 + $0x40] sm:$0xff]
  %v340 = vld [vmem:[%s5 + $0x48] sm:$0xff]
  %v341 = vld [vmem:[%s5 + $0x50] sm:$0xff]
  %v342 = vld [vmem:[%s5 + $0x58] sm:$0xff]
  %v343 = vld [vmem:[%s5 + $0x60] sm:$0xff]
  %v344 = vld [vmem:[%s5 + $0x68] sm:$0xff]
  %v345 = vld [vmem:[%s5 + $0x70] sm:$0xff]
  %v346 = vld [vmem:[%s5 + $0x78] sm:$0xff]
  %v347 = vld [vmem:[%s5 + $0x80] sm:$0xff]
  %v348 = vld [vmem:[%s5 + $0x88] sm:$0xff]
  %v349 = vld [vmem:[%s5 + $0x90] sm:$0xff]
  %v350 = vld [vmem:[%s5 + $0x98] sm:$0xff]
  %v351 = vld [vmem:[%s5 + $0xa0] sm:$0xff]
  %v352 = vld [vmem:[%s5 + $0xa8] sm:$0xff]
  %v353 = vld [vmem:[%s5 + $0xb0] sm:$0xff]
  %v354 = vld [vmem:[%s5 + $0xb8] sm:$0xff]
  %v355 = vld [vmem:[%s5 + $0xc0] sm:$0xff]
  %v356 = vld [vmem:[%s5 + $0xc8] sm:$0xff]
  %v357 = vld [vmem:[%s5 + $0xd0] sm:$0xff]
  %v358 = vld [vmem:[%s5 + $0xd8] sm:$0xff]
  %v359 = vld [vmem:[%s5 + $0xe0] sm:$0xff]
  %v360 = vld [vmem:[%s5 + $0xe8] sm:$0xff]
  %v361 = vld [vmem:[%s5 + $0xf0] sm:$0xff]
  %v362 = vld [vmem:[%s5 + $0xf8] sm:$0xff]
  %v363 = vld [vmem:[%s5 + $0x100] sm:$0xff]
  %v364 = vld [vmem:[%s5 + $0x108] sm:$0xff]
  %v365 = vld [vmem:[%s5 + $0x110] sm:$0xff]
  %v366 = vld [vmem:[%s5 + $0x118] sm:$0xff]
  %v367 = vld [vmem:[%s5 + $0x120] sm:$0xff]
  %v368 = vld [vmem:[%s5 + $0x128] sm:$0xff]
  %v369 = vld [vmem:[%s5 + $0x130] sm:$0xff]
  %v370 = vld [vmem:[%s5 + $0x138] sm:$0xff]
  %v371 = vld [vmem:[%s5 + $0x140] sm:$0xff]
  %v372 = vld [vmem:[%s5 + $0x148] sm:$0xff]
  %v373 = vld [vmem:[%s5 + $0x150] sm:$0xff]
  %v374 = vld [vmem:[%s5 + $0x158] sm:$0xff]
  %v375 = vld [vmem:[%s5 + $0x160] sm:$0xff]
  %v376 = vld [vmem:[%s5 + $0x168] sm:$0xff]
  %v377 = vld [vmem:[%s5 + $0x170] sm:$0xff]
  %v378 = vld [vmem:[%s5 + $0x178] sm:$0xff]
  %v379 = vld [vmem:[%s5 + $0x180] sm:$0xff]
  %v380 = vld [vmem:[%s5 + $0x188] sm:$0xff]
  %v381 = vld [vmem:[%s5 + $0x190] sm:$0xff]
  %v382 = vld [vmem:[%s5 + $0x198] sm:$0xff]
  %v383 = vld [vmem:[%s5 + $0x1a0] sm:$0xff]
  %v384 = vld [vmem:[%s5 + $0x1a8] sm:$0xff]
  %v385 = vld [vmem:[%s5 + $0x1b0] sm:$0xff]
  %v386 = vld [vmem:[%s5 + $0x1b8] sm:$0xff]
  %v387 = vld [vmem:[%s5 + $0x1c0] sm:$0xff]
  %v388 = vld [vmem:[%s5 + $0x1c8] sm:$0xff]
  %v389 = vld [vmem:[%s5 + $0x1d0] sm:$0xff]
  %v390 = vld [vmem:[%s5 + $0x1d8] sm:$0xff]
  %v391 = vld [vmem:[%s5 + $0x1e0] sm:$0xff]
  %v392 = vld [vmem:[%s5 + $0x1e8] sm:$0xff]
  %v393 = vld [vmem:[%s5 + $0x1f0] sm:$0xff]
  %v394 = vld [vmem:[%s5 + $0x1f8] sm:$0xff]
  %v395 = vld [vmem:[%s5 + $0x200] sm:$0xff]
  %v396 = vld [vmem:[%s5 + $0x208] sm:$0xff]
  %v397 = vld [vmem:[%s5 + $0x210] sm:$0xff]
  %v398 = vld [vmem:[%s5 + $0x218] sm:$0xff]
  %v399 = vld [vmem:[%s5 + $0x220] sm:$0xff]
  %v400 = vld [vmem:[%s5 + $0x228] sm:$0xff]
  %v401 = vld [vmem:[%s5 + $0x230] sm:$0xff]
  %v402 = vld [vmem:[%s5 + $0x238] sm:$0xff]
  %v403 = vld [vmem:[%s5 + $0x240] sm:$0xff]
  %v404 = vld [vmem:[%s5 + $0x248] sm:$0xff]
  %v405 = vld [vmem:[%s5 + $0x250] sm:$0xff]
  %v406 = vld [vmem:[%s5 + $0x258] sm:$0xff]
  %v407 = vld [vmem:[%s5 + $0x260] sm:$0xff]
  %v408 = vld [vmem:[%s5 + $0x268] sm:$0xff]
  %v409 = vld [vmem:[%s5 + $0x270] sm:$0xff]
  %v410 = vld [vmem:[%s5 + $0x278] sm:$0xff]
  %v411 = vld [vmem:[%s5 + $0x280] sm:$0xff]
  %v412 = vld [vmem:[%s5 + $0x288] sm:$0xff]
  %v413 = vld [vmem:[%s5 + $0x290] sm:$0xff]
  %v414 = vld [vmem:[%s5 + $0x298] sm:$0xff]
  %v415 = vld [vmem:[%s5 + $0x2a0] sm:$0xff]
  %v416 = vld [vmem:[%s5 + $0x2a8] sm:$0xff]
  %v417 = vld [vmem:[%s5 + $0x2b0] sm:$0xff]
  %v418 = vld [vmem:[%s5 + $0x2b8] sm:$0xff]
  %v419 = vld [vmem:[%s5 + $0x2c0] sm:$0xff]
  %v420 = vld [vmem:[%s5 + $0x2c8] sm:$0xff]
  %v421 = vld [vmem:[%s5 + $0x2d0] sm:$0xff]
  %v422 = vld [vmem:[%s5 + $0x2d8] sm:$0xff]
  %v423 = vld [vmem:[%s5 + $0x2e0] sm:$0xff]
  %v424 = vld [vmem:[%s5 + $0x2e8] sm:$0xff]
  %v425 = vld [vmem:[%s5 + $0x2f0] sm:$0xff]
  %v426 = vld [vmem:[%s5 + $0x2f8] sm:$0xff]
  %v427 = vld [vmem:[%s5 + $0x300] sm:$0xff]
  %v428 = vld [vmem:[%s5 + $0x308] sm:$0xff]
  %v429 = vld [vmem:[%s5 + $0x310] sm:$0xff]
  %v430 = vld [vmem:[%s5 + $0x318] sm:$0xff]
  %v431 = vld [vmem:[%s5 + $0x320] sm:$0xff]
  %v432 = vld [vmem:[%s5 + $0x328] sm:$0xff]
  %v433 = vld [vmem:[%s5 + $0x330] sm:$0xff]
  %v434 = vld [vmem:[%s5 + $0x338] sm:$0xff]
  %v435 = vld [vmem:[%s5 + $0x340] sm:$0xff]
  %v436 = vld [vmem:[%s5 + $0x348] sm:$0xff]
  %v437 = vld [vmem:[%s5 + $0x350] sm:$0xff]
  %v438 = vld [vmem:[%s5 + $0x358] sm:$0xff]
  %v439 = vld [vmem:[%s5 + $0x360] sm:$0xff]
  %v440 = vld [vmem:[%s5 + $0x368] sm:$0xff]
  %v441 = vld [vmem:[%s5 + $0x370] sm:$0xff]
  %v442 = vld [vmem:[%s5 + $0x378] sm:$0xff]
  %v443 = vld [vmem:[%s5 + $0x380] sm:$0xff]
  %v444 = vld [vmem:[%s5 + $0x388] sm:$0xff]
  %v445 = vld [vmem:[%s5 + $0x390] sm:$0xff]
  %v446 = vld [vmem:[%s5 + $0x398] sm:$0xff]
  %v447 = vld [vmem:[%s5 + $0x3a0] sm:$0xff]
  %v448 = vld [vmem:[%s5 + $0x3a8] sm:$0xff]
  %v449 = vld [vmem:[%s5 + $0x3b0] sm:$0xff]
  %v450 = vld [vmem:[%s5 + $0x3b8] sm:$0xff]
  %v451 = vld [vmem:[%s5 + $0x3c0] sm:$0xff]
  %v452 = vld [vmem:[%s5 + $0x3c8] sm:$0xff]
  %v453 = vld [vmem:[%s5 + $0x3d0] sm:$0xff]
  %v454 = vld [vmem:[%s5 + $0x3d8] sm:$0xff]
  %v455 = vld [vmem:[%s5 + $0x3e0] sm:$0xff]
  %v456 = vld [vmem:[%s5 + $0x3e8] sm:$0xff]
  %v457 = vld [vmem:[%s5 + $0x3f0] sm:$0xff]
  %v458 = vld [vmem:[%s5 + $0x3f8] sm:$0xff]
  %v459 = vld [vmem:[%s5 + $0x400] sm:$0xff]
  %v460 = vld [vmem:[%s5 + $0x408] sm:$0xff]
  %v461 = vld [vmem:[%s5 + $0x410] sm:$0xff]
  %v462 = vld [vmem:[%s5 + $0x418] sm:$0xff]
  %v463 = vld [vmem:[%s5 + $0x420] sm:$0xff]
  %v464 = vld [vmem:[%s5 + $0x428] sm:$0xff]
  %v465 = vld [vmem:[%s5 + $0x430] sm:$0xff]
  %v466 = vld [vmem:[%s5 + $0x438] sm:$0xff]
  %v467 = vld [vmem:[%s5 + $0x440] sm:$0xff]
  %v468 = vld [vmem:[%s5 + $0x448] sm:$0xff]
  %v469 = vld [vmem:[%s5 + $0x450] sm:$0xff]
  %v470 = vld [vmem:[%s5 + $0x458] sm:$0xff]
  %v471 = vld [vmem:[%s5 + $0x460] sm:$0xff]
  %v472 = vld [vmem:[%s5 + $0x468] sm:$0xff]
  %v473 = vld [vmem:[%s5 + $0x470] sm:$0xff]
  %v474 = vld [vmem:[%s5 + $0x478] sm:$0xff]
  %v475 = vld [vmem:[%s5 + $0x480] sm:$0xff]
  %v476 = vld [vmem:[%s5 + $0x488] sm:$0xff]
  %v477 = vld [vmem:[%s5 + $0x490] sm:$0xff]
  %v478 = vld [vmem:[%s5 + $0x498] sm:$0xff]
  %v479 = vld [vmem:[%s5 + $0x4a0] sm:$0xff]
  %v480 = vld [vmem:[%s5 + $0x4a8] sm:$0xff]
  %v481 = vld [vmem:[%s5 + $0x4b0] sm:$0xff]
  %v482 = vld [vmem:[%s5 + $0x4b8] sm:$0xff]
  %v483 = vld [vmem:[%s5 + $0x4c0] sm:$0xff]
  %v484 = vld [vmem:[%s5 + $0x4c8] sm:$0xff]
  %v485 = vld [vmem:[%s5 + $0x4d0] sm:$0xff]
  %v486 = vld [vmem:[%s5 + $0x4d8] sm:$0xff]
  %v487 = vld [vmem:[%s5 + $0x4e0] sm:$0xff]
  %v488 = vld [vmem:[%s5 + $0x4e8] sm:$0xff]
  %v489 = vld [vmem:[%s5 + $0x4f0] sm:$0xff]
  %v490 = vld [vmem:[%s5 + $0x4f8] sm:$0xff]
  %v491 = vld [vmem:[%s5 + $0x500] sm:$0xff]
  %v492 = vld [vmem:[%s5 + $0x508] sm:$0xff]
  %v493 = vld [vmem:[%s5 + $0x510] sm:$0xff]
  %v494 = vld [vmem:[%s5 + $0x518] sm:$0xff]
  %v495 = vld [vmem:[%s5 + $0x520] sm:$0xff]
  %v496 = vld [vmem:[%s5 + $0x528] sm:$0xff]
  %v497 = vld [vmem:[%s5 + $0x530] sm:$0xff]
  %v498 = vld [vmem:[%s5 + $0x538] sm:$0xff]
  %v499 = vld [vmem:[%s5 + $0x540] sm:$0xff]
  %v500 = vld [vmem:[%s5 + $0x548] sm:$0xff]
  %v501 = vld [vmem:[%s5 + $0x550] sm:$0xff]
  %v502 = vld [vmem:[%s5 + $0x558] sm:$0xff]
  %v503 = vld [vmem:[%s5 + $0x560] sm:$0xff]
  %v504 = vld [vmem:[%s5 + $0x568] sm:$0xff]
  %v505 = vld [vmem:[%s5 + $0x570] sm:$0xff]
  %v506 = vld [vmem:[%s5 + $0x578] sm:$0xff]
  %v507 = vld [vmem:[%s5 + $0x580] sm:$0xff]
  %v508 = vld [vmem:[%s5 + $0x588] sm:$0xff]
  %v509 = vld [vmem:[%s5 + $0x590] sm:$0xff]
  %v510 = vld [vmem:[%s5 + $0x598] sm:$0xff]
  %v511 = vld [vmem:[%s5 + $0x5a0] sm:$0xff]
  %v512 = vld [vmem:[%s5 + $0x5a8] sm:$0xff]
  %v513 = vld [vmem:[%s5 + $0x5b0] sm:$0xff]
  %v514 = vld [vmem:[%s5 + $0x5b8] sm:$0xff]
  %v515 = vld [vmem:[%s5 + $0x5c0] sm:$0xff]
  %v516 = vld [vmem:[%s5 + $0x5c8] sm:$0xff]
  %v517 = vld [vmem:[%s5 + $0x5d0] sm:$0xff]
  %v518 = vld [vmem:[%s5 + $0x5d8] sm:$0xff]
  %v519 = vld [vmem:[%s5 + $0x5e0] sm:$0xff]
  %v520 = vld [vmem:[%s5 + $0x5e8] sm:$0xff]
  %v521 = vld [vmem:[%s5 + $0x5f0] sm:$0xff]
  %v522 = vld [vmem:[%s5 + $0x5f8] sm:$0xff]
  %v523 = vld [vmem:[%s5 + $0x600] sm:$0xff]
  %v524 = vld [vmem:[%s5 + $0x608] sm:$0xff]
  %v525 = vld [vmem:[%s5 + $0x610] sm:$0xff]
  %v526 = vld [vmem:[%s5 + $0x618] sm:$0xff]
  %v527 = vld [vmem:[%s5 + $0x620] sm:$0xff]
  %v528 = vld [vmem:[%s5 + $0x628] sm:$0xff]
  %v529 = vld [vmem:[%s5 + $0x630] sm:$0xff]
  %v530 = vld [vmem:[%s5 + $0x638] sm:$0xff]
  %v531 = vld [vmem:[%s5 + $0x640] sm:$0xff]
  %v532 = vld [vmem:[%s5 + $0x648] sm:$0xff]
  %v533 = vld [vmem:[%s5 + $0x650] sm:$0xff]
  %v534 = vld [vmem:[%s5 + $0x658] sm:$0xff]
  %v535 = vld [vmem:[%s5 + $0x660] sm:$0xff]
  %v536 = vld [vmem:[%s5 + $0x668] sm:$0xff]
  %v537 = vld [vmem:[%s5 + $0x670] sm:$0xff]
  %v538 = vld [vmem:[%s5 + $0x678] sm:$0xff]
  %v539 = vld [vmem:[%s5 + $0x680] sm:$0xff]
  %v540 = vld [vmem:[%s5 + $0x688] sm:$0xff]
  %v541 = vld [vmem:[%s5 + $0x690] sm:$0xff]
  %v542 = vld [vmem:[%s5 + $0x698] sm:$0xff]
  %v543 = vld [vmem:[%s5 + $0x6a0] sm:$0xff]
  %v544 = vld [vmem:[%s5 + $0x6a8] sm:$0xff]
  %v545 = vld [vmem:[%s5 + $0x6b0] sm:$0xff]
  %v546 = vld [vmem:[%s5 + $0x6b8] sm:$0xff]
  %v547 = vld [vmem:[%s5 + $0x6c0] sm:$0xff]
  %v548 = vld [vmem:[%s5 + $0x6c8] sm:$0xff]
  %v549 = vld [vmem:[%s5 + $0x6d0] sm:$0xff]
  %v550 = vld [vmem:[%s5 + $0x6d8] sm:$0xff]
  %v551 = vld [vmem:[%s5 + $0x6e0] sm:$0xff]
  %v552 = vld [vmem:[%s5 + $0x6e8] sm:$0xff]
  %v553 = vld [vmem:[%s5 + $0x6f0] sm:$0xff]
  %v554 = vld [vmem:[%s5 + $0x6f8] sm:$0xff]
  %v555 = vld [vmem:[%s6] sm:$0x7f]
  %v557 = vperm.slane %v555, 0
  %v558 = vperm.slane %v555, 1
  %v559 = vperm.slane %v555, 2
  %v560 = vperm.slane %v555, 3
  %v561 = vperm.slane %v555, 4
  %v562 = vperm.slane %v555, 5
  %v563 = vperm.slane %v555, 6
  %571 = vmatpush.msra.mxu0 %v436
  %572 = vmatpush.msra.mxu0 %v429
  %573 = vmatpush.msra.mxu0 %v422
  %574 = vmatpush.msra.mxu0 %v415
  %575 = vmatpush.msra.mxu0 %v408
  %576 = vmatpush.msra.mxu0 %v401
  %577 = vmatpush.msra.mxu0 %v394
  %578 = vmatpush.msra.mxu0 %v387
  %579 = vmatpush.msra.mxu0 %v380
  %580 = vmatpush.msra.mxu0 %v373
  %581 = vmatpush.msra.mxu0 %v366
  %582 = vmatpush.msra.mxu0 %v359
  %583 = vmatpush.msra.mxu0 %v352
  %584 = vmatpush.msra.mxu0 %v345
  %585 = vmatpush.msra.mxu0 %v338
  %586 = vmatpush.msra.mxu0 %v331
  %587 = vmatmul.f32.gmra.mxu0 %v329
  %v588 = vpop.f32.mrf.mxu0
  %v589 = vadd.f32 %v557, %v588
  %590 = vdwg.mxu0
  %591 = vmatpush.msra.mxu0 %v548
  %592 = vmatpush.msra.mxu0 %v541
  %593 = vmatpush.msra.mxu0 %v534
  %594 = vmatpush.msra.mxu0 %v527
  %595 = vmatpush.msra.mxu0 %v520
  %596 = vmatpush.msra.mxu0 %v513
  %597 = vmatpush.msra.mxu0 %v506
  %598 = vmatpush.msra.mxu0 %v499
  %599 = vmatpush.msra.mxu0 %v492
  %600 = vmatpush.msra.mxu0 %v485
  %601 = vmatpush.msra.mxu0 %v478
  %602 = vmatpush.msra.mxu0 %v471
  %603 = vmatpush.msra.mxu0 %v464
  %604 = vmatpush.msra.mxu0 %v457
  %605 = vmatpush.msra.mxu0 %v450
  %606 = vmatpush.msra.mxu0 %v443
  %607 = vmatmul.f32.gmra.mxu0 %v330
  %v608 = vpop.f32.mrf.mxu0
  %v609 = vadd.f32 %v589, %v608
  %610 = vdwg.mxu0
  %611 = vmatpush.msra.mxu0 %v437
  %612 = vmatpush.msra.mxu0 %v430
  %613 = vmatpush.msra.mxu0 %v423
  %614 = vmatpush.msra.mxu0 %v416
  %615 = vmatpush.msra.mxu0 %v409
  %616 = vmatpush.msra.mxu0 %v402
  %617 = vmatpush.msra.mxu0 %v395
  %618 = vmatpush.msra.mxu0 %v388
  %619 = vmatpush.msra.mxu0 %v381
  %620 = vmatpush.msra.mxu0 %v374
  %621 = vmatpush.msra.mxu0 %v367
  %622 = vmatpush.msra.mxu0 %v360
  %623 = vmatpush.msra.mxu0 %v353
  %624 = vmatpush.msra.mxu0 %v346
  %625 = vmatpush.msra.mxu0 %v339
  %626 = vmatpush.msra.mxu0 %v332
  %627 = vmatmul.f32.gmra.mxu0 %v329
  %v628 = vpop.f32.mrf.mxu0
  %v629 = vadd.f32 %v558, %v628
  %630 = vdwg.mxu0
  %631 = vmatpush.msra.mxu0 %v549
  %632 = vmatpush.msra.mxu0 %v542
  %633 = vmatpush.msra.mxu0 %v535
  %634 = vmatpush.msra.mxu0 %v528
  %635 = vmatpush.msra.mxu0 %v521
  %636 = vmatpush.msra.mxu0 %v514
  %637 = vmatpush.msra.mxu0 %v507
  %638 = vmatpush.msra.mxu0 %v500
  %639 = vmatpush.msra.mxu0 %v493
  %640 = vmatpush.msra.mxu0 %v486
  %641 = vmatpush.msra.mxu0 %v479
  %642 = vmatpush.msra.mxu0 %v472
  %643 = vmatpush.msra.mxu0 %v465
  %644 = vmatpush.msra.mxu0 %v458
  %645 = vmatpush.msra.mxu0 %v451
  %646 = vmatpush.msra.mxu0 %v444
  %647 = vmatmul.f32.gmra.mxu0 %v330
  %v648 = vpop.f32.mrf.mxu0
  %v649 = vadd.f32 %v629, %v648
  %650 = vdwg.mxu0
  %651 = vmatpush.msra.mxu0 %v438
  %652 = vmatpush.msra.mxu0 %v431
  %653 = vmatpush.msra.mxu0 %v424
  %654 = vmatpush.msra.mxu0 %v417
  %655 = vmatpush.msra.mxu0 %v410
  %656 = vmatpush.msra.mxu0 %v403
  %657 = vmatpush.msra.mxu0 %v396
  %658 = vmatpush.msra.mxu0 %v389
  %659 = vmatpush.msra.mxu0 %v382
  %660 = vmatpush.msra.mxu0 %v375
  %661 = vmatpush.msra.mxu0 %v368
  %662 = vmatpush.msra.mxu0 %v361
  %663 = vmatpush.msra.mxu0 %v354
  %664 = vmatpush.msra.mxu0 %v347
  %665 = vmatpush.msra.mxu0 %v340
  %666 = vmatpush.msra.mxu0 %v333
  %667 = vmatmul.f32.gmra.mxu0 %v329
  %v668 = vpop.f32.mrf.mxu0
  %v669 = vadd.f32 %v559, %v668
  %670 = vdwg.mxu0
  %671 = vmatpush.msra.mxu0 %v550
  %672 = vmatpush.msra.mxu0 %v543
  %673 = vmatpush.msra.mxu0 %v536
  %674 = vmatpush.msra.mxu0 %v529
  %675 = vmatpush.msra.mxu0 %v522
  %676 = vmatpush.msra.mxu0 %v515
  %677 = vmatpush.msra.mxu0 %v508
  %678 = vmatpush.msra.mxu0 %v501
  %679 = vmatpush.msra.mxu0 %v494
  %680 = vmatpush.msra.mxu0 %v487
  %681 = vmatpush.msra.mxu0 %v480
  %682 = vmatpush.msra.mxu0 %v473
  %683 = vmatpush.msra.mxu0 %v466
  %684 = vmatpush.msra.mxu0 %v459
  %685 = vmatpush.msra.mxu0 %v452
  %686 = vmatpush.msra.mxu0 %v445
  %687 = vmatmul.f32.gmra.mxu0 %v330
  %v688 = vpop.f32.mrf.mxu0
  %v689 = vadd.f32 %v669, %v688
  %690 = vdwg.mxu0
  %691 = vmatpush.msra.mxu0 %v439
  %692 = vmatpush.msra.mxu0 %v432
  %693 = vmatpush.msra.mxu0 %v425
  %694 = vmatpush.msra.mxu0 %v418
  %695 = vmatpush.msra.mxu0 %v411
  %696 = vmatpush.msra.mxu0 %v404
  %697 = vmatpush.msra.mxu0 %v397
  %698 = vmatpush.msra.mxu0 %v390
  %699 = vmatpush.msra.mxu0 %v383
  %700 = vmatpush.msra.mxu0 %v376
  %701 = vmatpush.msra.mxu0 %v369
  %702 = vmatpush.msra.mxu0 %v362
  %703 = vmatpush.msra.mxu0 %v355
  %704 = vmatpush.msra.mxu0 %v348
  %705 = vmatpush.msra.mxu0 %v341
  %706 = vmatpush.msra.mxu0 %v334
  %707 = vmatmul.f32.gmra.mxu0 %v329
  %v708 = vpop.f32.mrf.mxu0
  %v709 = vadd.f32 %v560, %v708
  %710 = vdwg.mxu0
  %711 = vmatpush.msra.mxu0 %v551
  %712 = vmatpush.msra.mxu0 %v544
  %713 = vmatpush.msra.mxu0 %v537
  %714 = vmatpush.msra.mxu0 %v530
  %715 = vmatpush.msra.mxu0 %v523
  %716 = vmatpush.msra.mxu0 %v516
  %717 = vmatpush.msra.mxu0 %v509
  %718 = vmatpush.msra.mxu0 %v502
  %719 = vmatpush.msra.mxu0 %v495
  %720 = vmatpush.msra.mxu0 %v488
  %721 = vmatpush.msra.mxu0 %v481
  %722 = vmatpush.msra.mxu0 %v474
  %723 = vmatpush.msra.mxu0 %v467
  %724 = vmatpush.msra.mxu0 %v460
  %725 = vmatpush.msra.mxu0 %v453
  %726 = vmatpush.msra.mxu0 %v446
  %727 = vmatmul.f32.gmra.mxu0 %v330
  %v728 = vpop.f32.mrf.mxu0
  %v729 = vadd.f32 %v709, %v728
  %730 = vdwg.mxu0
  %731 = vmatpush.msra.mxu0 %v440
  %732 = vmatpush.msra.mxu0 %v433
  %733 = vmatpush.msra.mxu0 %v426
  %734 = vmatpush.msra.mxu0 %v419
  %735 = vmatpush.msra.mxu0 %v412
  %736 = vmatpush.msra.mxu0 %v405
  %737 = vmatpush.msra.mxu0 %v398
  %738 = vmatpush.msra.mxu0 %v391
  %739 = vmatpush.msra.mxu0 %v384
  %740 = vmatpush.msra.mxu0 %v377
  %741 = vmatpush.msra.mxu0 %v370
  %742 = vmatpush.msra.mxu0 %v363
  %743 = vmatpush.msra.mxu0 %v356
  %744 = vmatpush.msra.mxu0 %v349
  %745 = vmatpush.msra.mxu0 %v342
  %746 = vmatpush.msra.mxu0 %v335
  %747 = vmatmul.f32.gmra.mxu0 %v329
  %v748 = vpop.f32.mrf.mxu0
  %v749 = vadd.f32 %v561, %v748
  %750 = vdwg.mxu0
  %751 = vmatpush.msra.mxu0 %v552
  %752 = vmatpush.msra.mxu0 %v545
  %753 = vmatpush.msra.mxu0 %v538
  %754 = vmatpush.msra.mxu0 %v531
  %755 = vmatpush.msra.mxu0 %v524
  %756 = vmatpush.msra.mxu0 %v517
  %757 = vmatpush.msra.mxu0 %v510
  %758 = vmatpush.msra.mxu0 %v503
  %759 = vmatpush.msra.mxu0 %v496
  %760 = vmatpush.msra.mxu0 %v489
  %761 = vmatpush.msra.mxu0 %v482
  %762 = vmatpush.msra.mxu0 %v475
  %763 = vmatpush.msra.mxu0 %v468
  %764 = vmatpush.msra.mxu0 %v461
  %765 = vmatpush.msra.mxu0 %v454
  %766 = vmatpush.msra.mxu0 %v447
  %767 = vmatmul.f32.gmra.mxu0 %v330
  %v768 = vpop.f32.mrf.mxu0
  %v769 = vadd.f32 %v749, %v768
  %770 = vdwg.mxu0
  %771 = vmatpush.msra.mxu0 %v441
  %772 = vmatpush.msra.mxu0 %v434
  %773 = vmatpush.msra.mxu0 %v427
  %774 = vmatpush.msra.mxu0 %v420
  %775 = vmatpush.msra.mxu0 %v413
  %776 = vmatpush.msra.mxu0 %v406
  %777 = vmatpush.msra.mxu0 %v399
  %778 = vmatpush.msra.mxu0 %v392
  %779 = vmatpush.msra.mxu0 %v385
  %780 = vmatpush.msra.mxu0 %v378
  %781 = vmatpush.msra.mxu0 %v371
  %782 = vmatpush.msra.mxu0 %v364
  %783 = vmatpush.msra.mxu0 %v357
  %784 = vmatpush.msra.mxu0 %v350
  %785 = vmatpush.msra.mxu0 %v343
  %786 = vmatpush.msra.mxu0 %v336
  %787 = vmatmul.f32.gmra.mxu0 %v329
  %v788 = vpop.f32.mrf.mxu0
  %v789 = vadd.f32 %v562, %v788
  %790 = vdwg.mxu0
  %791 = vmatpush.msra.mxu0 %v553
  %792 = vmatpush.msra.mxu0 %v546
  %793 = vmatpush.msra.mxu0 %v539
  %794 = vmatpush.msra.mxu0 %v532
  %795 = vmatpush.msra.mxu0 %v525
  %796 = vmatpush.msra.mxu0 %v518
  %797 = vmatpush.msra.mxu0 %v511
  %798 = vmatpush.msra.mxu0 %v504
  %799 = vmatpush.msra.mxu0 %v497
  %800 = vmatpush.msra.mxu0 %v490
  %801 = vmatpush.msra.mxu0 %v483
  %802 = vmatpush.msra.mxu0 %v476
  %803 = vmatpush.msra.mxu0 %v469
  %804 = vmatpush.msra.mxu0 %v462
  %805 = vmatpush.msra.mxu0 %v455
  %806 = vmatpush.msra.mxu0 %v448
  %807 = vmatmul.f32.gmra.mxu0 %v330
  %v808 = vpop.f32.mrf.mxu0
  %v809 = vadd.f32 %v789, %v808
  %810 = vdwg.mxu0
  %811 = vmatpush.msra.mxu0 %v442
  %812 = vmatpush.msra.mxu0 %v435
  %813 = vmatpush.msra.mxu0 %v428
  %814 = vmatpush.msra.mxu0 %v421
  %815 = vmatpush.msra.mxu0 %v414
  %816 = vmatpush.msra.mxu0 %v407
  %817 = vmatpush.msra.mxu0 %v400
  %818 = vmatpush.msra.mxu0 %v393
  %819 = vmatpush.msra.mxu0 %v386
  %820 = vmatpush.msra.mxu0 %v379
  %821 = vmatpush.msra.mxu0 %v372
  %822 = vmatpush.msra.mxu0 %v365
  %823 = vmatpush.msra.mxu0 %v358
  %824 = vmatpush.msra.mxu0 %v351
  %825 = vmatpush.msra.mxu0 %v344
  %826 = vmatpush.msra.mxu0 %v337
  %827 = vmatmul.f32.gmra.mxu0 %v329
  %v828 = vpop.f32.mrf.mxu0
  %v829 = vadd.f32 %v563, %v828
  %830 = vdwg.mxu0
  %831 = vmatpush.msra.mxu0 %v554
  %832 = vmatpush.msra.mxu0 %v547
  %833 = vmatpush.msra.mxu0 %v540
  %834 = vmatpush.msra.mxu0 %v533
  %835 = vmatpush.msra.mxu0 %v526
  %836 = vmatpush.msra.mxu0 %v519
  %837 = vmatpush.msra.mxu0 %v512
  %838 = vmatpush.msra.mxu0 %v505
  %839 = vmatpush.msra.mxu0 %v498
  %840 = vmatpush.msra.mxu0 %v491
  %841 = vmatpush.msra.mxu0 %v484
  %842 = vmatpush.msra.mxu0 %v477
  %843 = vmatpush.msra.mxu0 %v470
  %844 = vmatpush.msra.mxu0 %v463
  %845 = vmatpush.msra.mxu0 %v456
  %846 = vmatpush.msra.mxu0 %v449
  %847 = vmatmul.f32.gmra.mxu0 %v330
  %v848 = vpop.f32.mrf.mxu0
  %v849 = vadd.f32 %v829, %v848
  %850 = vdwg.mxu0
  %851 = vst [vmem:[%s7] sm:$0xff] %v609
  %852 = vst [vmem:[%s7 + $0x8] sm:$0xff] %v649
  %853 = vst [vmem:[%s7 + $0x10] sm:$0xff] %v689
  %854 = vst [vmem:[%s7 + $0x18] sm:$0xff] %v729
  %855 = vst [vmem:[%s7 + $0x20] sm:$0xff] %v769
  %856 = vst [vmem:[%s7 + $0x28] sm:$0xff] %v809
  %vm857 = vcmask 130048
  %858 = vst.msk [vmem:[%s7 + $0x30] sm:$0xff] %vm857, %v849
  // Predicated region
  $region30: #{full_reco_net.1} parent=0 // pred_check
    _
  $region31: #{full_reco_net.1} parent=0 // pred_check_branch
    %860 = sbr.rel (0) target = $region33
  $region32: #{full_reco_net.1} parent=0 // pred_region
    _
  $region33: #{full_reco_net.1} parent=0 // pred_fallthru
    _
  // Predicated region
  $region34: #{full_reco_net.1} parent=0 // pred_check
    _
  $region35: #{full_reco_net.1} parent=0 // pred_check_branch
    %862 = sbr.rel (0) target = $region37
  $region36: #{full_reco_net.1} parent=0 // pred_region
    _
  $region37: #{full_reco_net.1} parent=0 // pred_fallthru
    _

</llo_original>
